<compile_context>
chip_gen: v7x
topology: tpu7x:2x2x1
jax: 0.10.0
libtpu: 0.0.40
codegen_flags: <defaults>
</compile_context>

<pallas_src>
import functools

import jax
import jax.numpy as jnp
from jax.experimental import pallas as pl
from jax.experimental.pallas import tpu as pltpu


_LANES = 128
_DEFAULT_TILE_N = 512  # >=512 rows amortizes the ~0.35 us/step fixed cost.


def _round_up(x, m):
    return ((x + m - 1) // m) * m


def _mlp_decoder_kernel(z_ref, w1_ref, b1_ref, w2_ref, b2_ref, o_ref):
    # fc1: [TILE_N, latent] @ [latent, NH_PAD] -> f32 accumulation on the MXU.
    h = jnp.dot(z_ref[...], w1_ref[...], preferred_element_type=jnp.float32)
    # Bias + ReLU in f32 on the VPU (padded hidden columns have bias 0 -> stay 0).
    h = jnp.maximum(h + b1_ref[...], 0.0)
    # fc2: cast activation to the (bf16) weight dtype for the MXU operand,
    # keep f32 accumulation. Padded obs columns come out exactly zero.
    out = jnp.dot(h.astype(w2_ref.dtype), w2_ref[...],
                  preferred_element_type=jnp.float32)
    o_ref[...] = (out + b2_ref[...]).astype(o_ref.dtype)


def prepare_decoder_params(w1, b1, w2, b2, compute_dtype=jnp.bfloat16):
    """One-time parameter prep (call once, outside the hot path):
    transpose weights to [in, out], zero-pad feature dims to 128-lane
    multiples, cast weights to the MXU compute dtype; biases stay f32."""
    nhidden, latent_dim = w1.shape
    obs_dim = w2.shape[0]
    nh_p = _round_up(nhidden, _LANES)
    ob_p = _round_up(obs_dim, _LANES)

    w1_t = jnp.zeros((latent_dim, nh_p), compute_dtype)
    w1_t = w1_t.at[:, :nhidden].set(w1.T.astype(compute_dtype))
    b1_p = jnp.zeros((1, nh_p), jnp.float32).at[:, :nhidden].set(
        b1.astype(jnp.float32))

    w2_t = jnp.zeros((nh_p, ob_p), compute_dtype)
    w2_t = w2_t.at[:nhidden, :obs_dim].set(w2.T.astype(compute_dtype))
    b2_p = jnp.zeros((1, ob_p), jnp.float32).at[:, :obs_dim].set(
        b2.astype(jnp.float32))
    return w1_t, b1_p, w2_t, b2_p


@functools.partial(jax.jit, static_argnames=("obs_dim", "tile_n"))
def mlp_decoder_pallas(z, w1_t, b1_p, w2_t, b2_p, *, obs_dim,
                       tile_n=_DEFAULT_TILE_N):
    """z: [N, latent_dim] f32.  Returns [N, obs_dim] f32."""
    n, latent_dim = z.shape
    nh_p = w1_t.shape[1]
    ob_p = w2_t.shape[1]

    # Tile the batch: a full-batch block for small N (full-dim blocks are
    # exempt from the (8,128) rule), else >=512-row tiles (divisible by 8).
    tile = n if n <= tile_n else tile_n
    grid = (pl.cdiv(n, tile),)

    # Compute-dtype (bf16) operands at the call boundary; accumulation is f32.
    zc = z.astype(w1_t.dtype)

    itm = jnp.dtype(w1_t.dtype).itemsize
    flops = 2 * n * nh_p * (latent_dim + ob_p)
    bytes_accessed = (n * latent_dim * itm                 # z
                      + (latent_dim + ob_p) * nh_p * itm   # weights (resident)
                      + (nh_p + ob_p) * 4                  # biases
                      + n * ob_p * 4)                      # padded output

    out_padded = pl.pallas_call(
        _mlp_decoder_kernel,
        out_shape=jax.ShapeDtypeStruct((n, ob_p), jnp.float32),
        grid=grid,
        in_specs=[
            pl.BlockSpec((tile, latent_dim), lambda i: (i, 0)),   # z row tile
            pl.BlockSpec((latent_dim, nh_p), lambda i: (0, 0)),   # W1^T resident
            pl.BlockSpec((1, nh_p), lambda i: (0, 0)),            # b1 resident
            pl.BlockSpec((nh_p, ob_p), lambda i: (0, 0)),         # W2^T resident
            pl.BlockSpec((1, ob_p), lambda i: (0, 0)),            # b2 resident
        ],
        out_specs=pl.BlockSpec((tile, ob_p), lambda i: (i, 0)),   # lane-dense
        compiler_params=pltpu.CompilerParams(
            dimension_semantics=("parallel",)),
        cost_estimate=pl.CostEstimate(
            flops=int(flops), transcendentals=0,
            bytes_accessed=int(bytes_accessed)),
    )(zc, w1_t, b1_p, w2_t, b2_p)

    # Drop the lane padding (cheap XLA slice).
    return out_padded[:, :obs_dim]


def _ref_forward(z, w1, b1, w2, b2):
    h = jnp.maximum(z @ w1.T + b1, 0.0)
    return h @ w2.T + b2


def _ref_forward_matched(z, w1_t, b1_p, w2_t, b2_p, obs_dim):
    # Mirrors the kernel's bf16-operand / f32-accumulate recipe (tight check).
    h = jnp.dot(z.astype(w1_t.dtype), w1_t,
                preferred_element_type=jnp.float32) + b1_p
    h = jnp.maximum(h, 0.0)
    out = jnp.dot(h.astype(w2_t.dtype), w2_t,
                  preferred_element_type=jnp.float32) + b2_p
    return out[:, :obs_dim]


if __name__ == "__main__":
    latent_dim, obs_dim, nhidden = 4, 2, 20
    batch = 8

    key = jax.random.PRNGKey(0)
    k_z, k_w1, k_b1, k_w2, k_b2, k_zbig = jax.random.split(key, 6)

    # Deterministic synthetic parameters (uniform like torch's default init scale).
    bound1 = 1.0 / (latent_dim ** 0.5)
    bound2 = 1.0 / (nhidden ** 0.5)
    w1 = jax.random.uniform(k_w1, (nhidden, latent_dim), jnp.float32, -bound1, bound1)
    b1 = jax.random.uniform(k_b1, (nhidden,), jnp.float32, -bound1, bound1)
    w2 = jax.random.uniform(k_w2, (obs_dim, nhidden), jnp.float32, -bound2, bound2)
    b2 = jax.random.uniform(k_b2, (obs_dim,), jnp.float32, -bound2, bound2)

    # One-time weight prep (transpose + pad + bf16 cast) outside the hot path.
    params = prepare_decoder_params(w1, b1, w2, b2)

    # Small batch (matches the module's tiny shapes).
    z = jax.random.normal(k_z, (batch, latent_dim), jnp.float32)
    out = jax.block_until_ready(mlp_decoder_pallas(z, *params, obs_dim=obs_dim))
    assert out.shape == (batch, obs_dim), out.shape

    # Tight check vs. a reference using the same bf16-in / f32-acc recipe.
    ref_m = _ref_forward_matched(z, *params, obs_dim=obs_dim)
    assert jnp.allclose(out, ref_m, atol=1e-3, rtol=1e-3), "kernel mismatch"
    # Loose check vs. the full-f32 PyTorch-equivalent reference (bf16 inputs).
    ref = _ref_forward(z, w1, b1, w2, b2)
    assert jnp.allclose(out, ref, atol=5e-2, rtol=5e-2), "bf16 drift too large"

    # Larger batch: exercises the tiled grid (incl. a partial last tile).
    n_big = 1000
    z_big = jax.random.normal(k_zbig, (n_big, latent_dim), jnp.float32)
    out_big = jax.block_until_ready(
        mlp_decoder_pallas(z_big, *params, obs_dim=obs_dim))
    ref_big = _ref_forward_matched(z_big, *params, obs_dim=obs_dim)
    assert out_big.shape == (n_big, obs_dim), out_big.shape
    assert jnp.allclose(out_big, ref_big, atol=1e-3, rtol=1e-3), "tiled mismatch"

    print("KERNEL_OK")
</pallas_src>

<mosaic_0001>
module attributes {stable_mosaic.version = 11 : i64} {
  func.func @_mlp_decoder_kernel(%arg0: i32, %arg1: memref<8x4xbf16, #tpu.memory_space<vmem>>, %arg2: memref<4x128xbf16, #tpu.memory_space<vmem>>, %arg3: memref<1x128xf32, #tpu.memory_space<vmem>>, %arg4: memref<128x128xbf16, #tpu.memory_space<vmem>>, %arg5: memref<1x128xf32, #tpu.memory_space<vmem>>, %arg6: memref<8x128xf32, #tpu.memory_space<vmem>>) attributes {dimension_semantics = [#tpu.dimension_semantics<parallel>], iteration_bounds = array<i64: 1>, scalar_prefetch = 0 : i64, scratch_operands = 0 : i64, tpu.core_type = #tpu.core_type<tc>, window_params = [{transform_indices = @transform_0, window_bounds = array<i64: 8, 4>}, {pipeline_mode = #tpu.pipeline_mode<synchronous>, transform_indices = @transform_1, window_bounds = array<i64: 4, 128>}, {pipeline_mode = #tpu.pipeline_mode<synchronous>, transform_indices = @transform_2, window_bounds = array<i64: 1, 128>}, {pipeline_mode = #tpu.pipeline_mode<synchronous>, transform_indices = @transform_3, window_bounds = array<i64: 128, 128>}, {pipeline_mode = #tpu.pipeline_mode<synchronous>, transform_indices = @transform_4, window_bounds = array<i64: 1, 128>}, {transform_indices = @transform_5, window_bounds = array<i64: 8, 128>}]} {
    %c0 = arith.constant 0 : index
    %c0_0 = arith.constant 0 : index
    %0 = vector.load %arg1[%c0, %c0_0] : memref<8x4xbf16, #tpu.memory_space<vmem>>, vector<8x4xbf16>
    %c0_1 = arith.constant 0 : index
    %c0_2 = arith.constant 0 : index
    %1 = vector.load %arg2[%c0_1, %c0_2] : memref<4x128xbf16, #tpu.memory_space<vmem>>, vector<4x128xbf16>
    %cst = arith.constant dense<0.000000e+00> : vector<8x128xf32>
    %2 = tpu.matmul %0, %1, %cst {dimension_numbers = #tpu.dot_dimension_numbers<[1], [0], [0], [1], [0, 0, 1, 1], [], []>} : vector<8x4xbf16>, vector<4x128xbf16>, vector<8x128xf32> -> vector<8x128xf32>
    %c0_3 = arith.constant 0 : index
    %c0_4 = arith.constant 0 : index
    %3 = vector.load %arg3[%c0_3, %c0_4] : memref<1x128xf32, #tpu.memory_space<vmem>>, vector<1x128xf32>
    %4 = vector.broadcast %3 : vector<1x128xf32> to vector<8x128xf32>
    %5 = arith.addf %2, %4 : vector<8x128xf32>
    %cst_5 = arith.constant 0.000000e+00 : f32
    %6 = vector.broadcast %cst_5 : f32 to vector<8x128xf32>
    %7 = arith.maximumf %5, %6 : vector<8x128xf32>
    %8 = arith.truncf %7 : vector<8x128xf32> to vector<8x128xbf16>
    %c0_6 = arith.constant 0 : index
    %c0_7 = arith.constant 0 : index
    %9 = vector.load %arg4[%c0_6, %c0_7] : memref<128x128xbf16, #tpu.memory_space<vmem>>, vector<128x128xbf16>
    %cst_8 = arith.constant dense<0.000000e+00> : vector<8x128xf32>
    %10 = tpu.matmul %8, %9, %cst_8 {dimension_numbers = #tpu.dot_dimension_numbers<[1], [0], [0], [1], [0, 0, 1, 1], [], []>} : vector<8x128xbf16>, vector<128x128xbf16>, vector<8x128xf32> -> vector<8x128xf32>
    %c0_9 = arith.constant 0 : index
    %c0_10 = arith.constant 0 : index
    %11 = vector.load %arg5[%c0_9, %c0_10] : memref<1x128xf32, #tpu.memory_space<vmem>>, vector<1x128xf32>
    %12 = vector.broadcast %11 : vector<1x128xf32> to vector<8x128xf32>
    %13 = arith.addf %10, %12 : vector<8x128xf32>
    %c0_11 = arith.constant 0 : index
    %c0_12 = arith.constant 0 : index
    %14 = vector.load %arg6[%c0_11, %c0_12] : memref<8x128xf32, #tpu.memory_space<vmem>>, vector<8x128xf32>
    tpu.vector_store %arg6[%c0_11, %c0_12], %13 {strides = array<i32>} : memref<8x128xf32, #tpu.memory_space<vmem>>, vector<8x128xf32>,
    return
  }
  func.func @transform_0(%arg0: i32) -> (i32, i32) {
    %c0_i32 = arith.constant 0 : i32
    %c0_i32_0 = arith.constant 0 : i32
    return %arg0, %c0_i32 : i32, i32
  }
  func.func @transform_1(%arg0: i32) -> (i32, i32) {
    %c0_i32 = arith.constant 0 : i32
    %c0_i32_0 = arith.constant 0 : i32
    %c0_i32_1 = arith.constant 0 : i32
    return %c0_i32, %c0_i32_0 : i32, i32
  }
  func.func @transform_2(%arg0: i32) -> (i32, i32) {
    %c0_i32 = arith.constant 0 : i32
    %c0_i32_0 = arith.constant 0 : i32
    %c0_i32_1 = arith.constant 0 : i32
    return %c0_i32, %c0_i32_0 : i32, i32
  }
  func.func @transform_3(%arg0: i32) -> (i32, i32) {
    %c0_i32 = arith.constant 0 : i32
    %c0_i32_0 = arith.constant 0 : i32
    %c0_i32_1 = arith.constant 0 : i32
    return %c0_i32, %c0_i32_0 : i32, i32
  }
  func.func @transform_4(%arg0: i32) -> (i32, i32) {
    %c0_i32 = arith.constant 0 : i32
    %c0_i32_0 = arith.constant 0 : i32
    %c0_i32_1 = arith.constant 0 : i32
    return %c0_i32, %c0_i32_0 : i32, i32
  }
  func.func @transform_5(%arg0: i32) -> (i32, i32) {
    %c0_i32 = arith.constant 0 : i32
    %c0_i32_0 = arith.constant 0 : i32
    return %arg0, %c0_i32 : i32, i32
  }
}

</mosaic_0001>

<llo_original>
// kernel: mlp_decoder_pallas.1
$region0: #{mlp_decoder_pallas.1}
  #allocation0 [shape = 'u32[]', space=smem, size = 0x4, offset = 0x4, fixed_abs, tag = 'smem constant byte address 0x4 - core index']
  #allocation1 [shape = 'u32[144,128]{1,0:T(1,128)}', space=vmem, size = 0x12000, scoped, tag = 'internal scratch']
  %s0 = inlined_call_operand.vmem [shape: bf16[8,4], index: 0, kind: input, shape index: {}]
  %s1 = inlined_call_operand.vmem [shape: bf16[4,128], index: 1, kind: input, shape index: {}]
  %s2 = inlined_call_operand.vmem [shape: f32[1,128], index: 2, kind: input, shape index: {}]
  %s3 = inlined_call_operand.hbm [shape: bf16[128,128], index: 3, kind: input, shape index: {}]
  %s4 = inlined_call_operand.vmem [shape: f32[1,128], index: 4, kind: input, shape index: {}]
  %s5 = inlined_call_operand.vmem [shape: f32[8,128], index: 5, kind: output, shape index: {}]
  %s6 = sld [smem:[#allocation0]]
  $region34: #{mlp_decoder_pallas.1} parent=0
    _
  %s8 = ssub.s32 1, %s6
  %s9 = scalar_select 0, %s8, %s6
  $region1: #{mlp_decoder_pallas.1} parent=0
    #allocation2 [shape = 'u8[32768]{0}', space=vmem, size = 0x8000, scoped, tag = 'input window, operand 3, single buffered']
    #allocation3 [shape = 's32[1]{0}', space=sflag, size = 0x4, scoped, tag = 'scoped memory for mlp_decoder_pallas.1']
    %10 = vsyncpa [#allocation3], 0
    // Predicated region
    $region2: #{mlp_decoder_pallas.1} parent=1 // pred_check
      _
    $region3: #{mlp_decoder_pallas.1} parent=1 // pred_check_branch
      %12 = sbr.rel (0) target = $region5
    $region4: #{mlp_decoder_pallas.1} parent=1 // pred_region
      _
    $region5: #{mlp_decoder_pallas.1} parent=1 // pred_fallthru
      _
    // Predicated region
    $region6: #{mlp_decoder_pallas.1} parent=1 // pred_check
      _
    $region7: #{mlp_decoder_pallas.1} parent=1 // pred_check_branch
      %14 = sbr.rel (0) target = $region9
    $region8: #{mlp_decoder_pallas.1} parent=1 // pred_region
      _
    $region9: #{mlp_decoder_pallas.1} parent=1 // pred_fallthru
      _
    // Predicated region
    $region10: #{mlp_decoder_pallas.1} parent=1 // pred_check
      _
    $region11: #{mlp_decoder_pallas.1} parent=1 // pred_check_branch
      %16 = sbr.rel (0) target = $region13
    $region12: #{mlp_decoder_pallas.1} parent=1 // pred_region
      _
    $region13: #{mlp_decoder_pallas.1} parent=1 // pred_fallthru
      _
    // Predicated region
    $region14: #{mlp_decoder_pallas.1} parent=1 // pred_check
      _
    $region15: #{mlp_decoder_pallas.1} parent=1 // pred_check_branch
      %18 = sbr.rel (0) target = $region17
    $region16: #{mlp_decoder_pallas.1} parent=1 // pred_region
      %s20 = ssub.s32 1024, 1024
      %21 = vsyncadd [#allocation3], %s20
      %s22 = sshll.u32 [#allocation2], 4
      %s23 = int_to_ptr.vmem [resolvable:$true] %s22
      %28 = dma.hbm_to_vmem [thread:$0]  %s3, 1024, %s23, [#allocation3], 64, 64, 4
    $region17: #{mlp_decoder_pallas.1} parent=1 // pred_fallthru
      _
    // Predicated region
    $region18: #{mlp_decoder_pallas.1} parent=1 // pred_check
      _
    $region19: #{mlp_decoder_pallas.1} parent=1 // pred_check_branch
      %30 = sbr.rel (0) target = $region21
    $region20: #{mlp_decoder_pallas.1} parent=1 // pred_region
      _
    $region21: #{mlp_decoder_pallas.1} parent=1 // pred_fallthru
      _
    // Predicated region
    $region22: #{mlp_decoder_pallas.1} parent=1 // pred_check
      _
    $region23: #{mlp_decoder_pallas.1} parent=1 // pred_check_branch
      %32 = sbr.rel (0) target = $region25
    $region24: #{mlp_decoder_pallas.1} parent=1 // pred_region
      %33 = dma.done [#allocation3], 1024
    $region25: #{mlp_decoder_pallas.1} parent=1 // pred_fallthru
      _
    %v35 = vld [vmem:[%s0] sm:$0xf]
    %v36 = vld [vmem:[%s1] sm:$0x3]
    %v37 = vld [vmem:[%s2] sm:$0x1]
    %v39 = vlaneseq
    %v40 = vshrl.u32 %v39, 7
    %v41 = vsub.s32 0, %v40
    %v42 = vrot.slane %v37, %v41
    %vm44 = vcmask 31744
    %v46 = vsel %vm44, %v35, 0
    %vm48 = vcmask 1041408
    %v50 = vsel %vm48, %v36, 0
    %52 = vmatprep.subr.bf16.mxu0 0
    %53 = vmatpush1.bf16.msra.mxu0 %v50
    %54 = vmatprep.subr.bf16.mxu0 0
    %55 = vmatpush1.bf16.msra.mxu0 0
    %56 = vmatprep.subr.bf16.mxu0 0
    %57 = vmatpush1.bf16.msra.mxu0 0
    %58 = vmatprep.subr.bf16.mxu0 0
    %59 = vmatpush1.bf16.msra.mxu0 0
    %60 = vmatprep.subr.bf16.mxu0 0
    %61 = vmatpush1.bf16.msra.mxu0 0
    %62 = vmatprep.subr.bf16.mxu0 0
    %63 = vmatpush1.bf16.msra.mxu0 0
    %64 = vmatprep.subr.bf16.mxu0 0
    %65 = vmatpush1.bf16.msra.mxu0 0
    %66 = vmatprep.subr.bf16.mxu0 0
    %67 = vmatpush1.bf16.msra.mxu0 0
    %68 = vmatprep.subr.bf16.mxu0 0
    %69 = vmatpush1.bf16.msra.mxu0 0
    %70 = vmatprep.subr.bf16.mxu0 0
    %71 = vmatpush1.bf16.msra.mxu0 0
    %72 = vmatprep.subr.bf16.mxu0 0
    %73 = vmatpush1.bf16.msra.mxu0 0
    %74 = vmatprep.subr.bf16.mxu0 0
    %75 = vmatpush1.bf16.msra.mxu0 0
    %76 = vmatprep.subr.bf16.mxu0 0
    %77 = vmatpush1.bf16.msra.mxu0 0
    %78 = vmatprep.subr.bf16.mxu0 0
    %79 = vmatpush1.bf16.msra.mxu0 0
    %80 = vmatprep.subr.bf16.mxu0 0
    %81 = vmatpush1.bf16.msra.mxu0 0
    %82 = vmatprep.subr.bf16.mxu0 0
    %83 = vmatpush1.bf16.msra.mxu0 0
    %84 = vmatprep.mubr.bf16.mxu0 0
    %85 = vmatmul.mubr.bf16.gmra.mrb[0].mxu0 %v46
    %v86 = vpop.f32.mrb[0].mxu0
    %v87 = vadd.f32 %v42, %v86
    %v88 = vpop.f32.mrb[0].mxu0
    %v89 = vpop.f32.mrb[0].mxu0
    %v90 = vpop.f32.mrb[0].mxu0
    %91 = vdwg.mxu0
    %v92 = vmax.f32 %v87, 0.0
    %v93 = vpack.c.bf16 %v92, %v92
    %v94 = vld [vmem:[#allocation2] sm:$0xf]
    %v95 = vld [vmem:[#allocation2 + $0x4] sm:$0xf]
    %v96 = vld [vmem:[#allocation2 + $0x8] sm:$0xf]
    %v97 = vld [vmem:[#allocation2 + $0xc] sm:$0xf]
    %v98 = vld [vmem:[#allocation2 + $0x10] sm:$0xf]
    %v99 = vld [vmem:[#allocation2 + $0x14] sm:$0xf]
    %v100 = vld [vmem:[#allocation2 + $0x18] sm:$0xf]
    %v101 = vld [vmem:[#allocation2 + $0x1c] sm:$0xf]
    %v102 = vld [vmem:[#allocation2 + $0x20] sm:$0xf]
    %v103 = vld [vmem:[#allocation2 + $0x24] sm:$0xf]
    %v104 = vld [vmem:[#allocation2 + $0x28] sm:$0xf]
    %v105 = vld [vmem:[#allocation2 + $0x2c] sm:$0xf]
    %v106 = vld [vmem:[#allocation2 + $0x30] sm:$0xf]
    %v107 = vld [vmem:[#allocation2 + $0x34] sm:$0xf]
    %v108 = vld [vmem:[#allocation2 + $0x38] sm:$0xf]
    %v109 = vld [vmem:[#allocation2 + $0x3c] sm:$0xf]
    %v110 = vld [vmem:[%s4] sm:$0x1]
    %v112 = vlaneseq
    %v113 = vshrl.u32 %v112, 7
    %v114 = vsub.s32 0, %v113
    %v115 = vrot.slane %v110, %v114
    %v133 = vunpack.c.l.b16 %v94
    %v134 = vunpack.c.l.b16 %v95
    %v135 = vunpack.c.l.b16 %v96
    %v136 = vunpack.c.l.b16 %v97
    %v137 = vunpack.c.l.b16 %v98
    %v138 = vunpack.c.l.b16 %v99
    %v139 = vunpack.c.l.b16 %v100
    %v140 = vunpack.c.l.b16 %v101
    %v141 = vunpack.c.l.b16 %v102
    %v142 = vunpack.c.l.b16 %v103
    %v143 = vunpack.c.l.b16 %v104
    %v144 = vunpack.c.l.b16 %v105
    %v145 = vunpack.c.l.b16 %v106
    %v146 = vunpack.c.l.b16 %v107
    %v147 = vunpack.c.l.b16 %v108
    %v148 = vunpack.c.l.b16 %v109
    %v149 = vpack.c.b16 %v134, %v133
    %v150 = vpack.c.b16 %v136, %v135
    %v151 = vpack.c.b16 %v138, %v137
    %v152 = vpack.c.b16 %v140, %v139
    %v153 = vpack.c.b16 %v142, %v141
    %v154 = vpack.c.b16 %v144, %v143
    %v155 = vpack.c.b16 %v146, %v145
    %v156 = vpack.c.b16 %v148, %v147
    %165 = vmatprep.subr.bf16.mxu0 0
    %166 = vmatpush1.bf16.msra.mxu0 %v149
    %167 = vmatprep.subr.bf16.mxu0 0
    %168 = vmatpush1.bf16.msra.mxu0 %v150
    %169 = vmatprep.subr.bf16.mxu0 0
    %170 = vmatpush1.bf16.msra.mxu0 %v151
    %171 = vmatprep.subr.bf16.mxu0 0
    %172 = vmatpush1.bf16.msra.mxu0 %v152
    %173 = vmatprep.subr.bf16.mxu0 0
    %174 = vmatpush1.bf16.msra.mxu0 %v153
    %175 = vmatprep.subr.bf16.mxu0 0
    %176 = vmatpush1.bf16.msra.mxu0 %v154
    %177 = vmatprep.subr.bf16.mxu0 0
    %178 = vmatpush1.bf16.msra.mxu0 %v155
    %179 = vmatprep.subr.bf16.mxu0 0
    %180 = vmatpush1.bf16.msra.mxu0 %v156
    %181 = vmatprep.subr.bf16.mxu0 0
    %182 = vmatpush1.bf16.msra.mxu0 0
    %183 = vmatprep.subr.bf16.mxu0 0
    %184 = vmatpush1.bf16.msra.mxu0 0
    %185 = vmatprep.subr.bf16.mxu0 0
    %186 = vmatpush1.bf16.msra.mxu0 0
    %187 = vmatprep.subr.bf16.mxu0 0
    %188 = vmatpush1.bf16.msra.mxu0 0
    %189 = vmatprep.subr.bf16.mxu0 0
    %190 = vmatpush1.bf16.msra.mxu0 0
    %191 = vmatprep.subr.bf16.mxu0 0
    %192 = vmatpush1.bf16.msra.mxu0 0
    %193 = vmatprep.subr.bf16.mxu0 0
    %194 = vmatpush1.bf16.msra.mxu0 0
    %195 = vmatprep.subr.bf16.mxu0 0
    %196 = vmatpush1.bf16.msra.mxu0 0
    %197 = vmatprep.mubr.bf16.mxu0 0
    %198 = vmatmul.mubr.bf16.gmra.mrb[0].mxu0 %v93
    %v199 = vpop.f32.mrb[0].mxu0
    %v200 = vadd.f32 %v115, %v199
    %v201 = vpop.f32.mrb[0].mxu0
    %v202 = vpop.f32.mrb[0].mxu0
    %v203 = vpop.f32.mrb[0].mxu0
    %204 = vdwg.mxu0
    %205 = vst [vmem:[%s5] sm:$0xff] %v200
    // Predicated region
    $region26: #{mlp_decoder_pallas.1} parent=1 // pred_check
      _
    $region27: #{mlp_decoder_pallas.1} parent=1 // pred_check_branch
      %207 = sbr.rel (0) target = $region29
    $region28: #{mlp_decoder_pallas.1} parent=1 // pred_region
      _
    $region29: #{mlp_decoder_pallas.1} parent=1 // pred_fallthru
      _
    // Predicated region
    $region30: #{mlp_decoder_pallas.1} parent=1 // pred_check
      _
    $region31: #{mlp_decoder_pallas.1} parent=1 // pred_check_branch
      %209 = sbr.rel (0) target = $region33
    $region32: #{mlp_decoder_pallas.1} parent=1 // pred_region
      _
    $region33: #{mlp_decoder_pallas.1} parent=1 // pred_fallthru
      _
    %210 = vsyncpa [#allocation3], 1

</llo_original>
